<compile_context>
chip_gen: v6e
topology: v6e:2x2x1
jax: 0.10.0
libtpu: 0.0.40
codegen_flags: <defaults>
</compile_context>

<pallas_src>
import math

import jax
import jax.numpy as jnp
from jax import lax
from jax.experimental import pallas as pl
from jax.experimental.pallas import tpu as pltpu

IN_CHANNELS = 9      # ModelWrapper default in_channels=9
HIDDEN = 32
TIME_EMB_DIM = 16
SEQ_LEN = 16
BATCH = 2

_NEG_LOG_10000 = -math.log(10000.0)


def _fused_denoiser_kernel(t_ref, x_ref, s1_ref, s2_ref, o_ref):
    """Single invocation, whole problem.

    t_ref : (B,)  int32 diffusion time steps, in SMEM
    x_ref : (B, C, L) f32 input, PyTorch NCL layout, in VMEM
    s1_ref: (H, D+C+2) packed [w_t^T | b_t | w_in^T | b_in]
    s2_ref: (C, H+1)   packed [w_out^T | b_out]
    o_ref : (B, C, L) f32 output
    """
    B, C, L = x_ref.shape
    H = s1_ref.shape[0]
    D = s1_ref.shape[1] - C - 2
    half = D // 2
    BL = B * L

    # ---- packed-slab views (static slices -> cheap sub-window loads) ----
    w_t = s1_ref[:, 0:D]                        # (H, D)
    b_t = s1_ref[:, D:D + 1]                    # (H, 1)
    w_in = s1_ref[:, D + 1:D + 1 + C]           # (H, C)
    b_in = s1_ref[:, D + 1 + C:D + 2 + C]       # (H, 1)
    w_out = s2_ref[:, 0:H]                      # (C, H)
    b_out = s2_ref[:, H:H + 1]                  # (C, 1)

    # ---- in-kernel sinusoidal time embedding, built directly at (half, B*L) ----
    # lane column j belongs to batch j // L; splat the matching SMEM time step.
    lane_id = lax.broadcasted_iota(jnp.int32, (half, BL), 1)
    t_lane = jnp.zeros((half, BL), jnp.float32)
    for b in range(B):                                           # static unroll (B tiny)
        in_b = (lane_id >= b * L) & (lane_id < (b + 1) * L)
        t_lane = jnp.where(in_b, t_ref[b].astype(jnp.float32), t_lane)
    k = lax.broadcasted_iota(jnp.int32, (half, BL), 0).astype(jnp.float32)
    freqs = jnp.exp(k * (_NEG_LOG_10000 / half))                 # EUP exp
    args = freqs * t_lane
    emb = jnp.concatenate([jnp.sin(args), jnp.cos(args)], axis=0)  # (D, BL)

    # ---- fused time-embedding MLP: (H,D)@(D,BL) + b_t, SiLU ----
    temb = jnp.dot(w_t, emb, preferred_element_type=jnp.float32) + b_t
    # SiLU: x * sigmoid(x); reciprocal routed to the EUP slot (approx, ~free).
    temb = temb * pl.reciprocal(1.0 + jnp.exp(-temb), approx=True)

    # ---- batch folded into lanes: x presented as (C, B*L) ----
    x_wide = jnp.concatenate([x_ref[b] for b in range(B)], axis=1)  # (C, BL)

    # pointwise input conv + bias + temb, ReLU   (single MXU issue over all lanes)
    h = jnp.dot(w_in, x_wide, preferred_element_type=jnp.float32) + b_in + temb
    h = jnp.maximum(h, 0.0)
    # pointwise output conv + bias               (single MXU issue)
    y = jnp.dot(w_out, h, preferred_element_type=jnp.float32) + b_out   # (C, BL)

    # split lanes back into the (B, C, L) output layout (keeps the forward to one
    # device dispatch; a lane-dense (C, B*L) out_spec would need a wrapper transpose).
    for b in range(B):
        o_ref[b] = y[:, b * L:(b + 1) * L].astype(o_ref.dtype)


def pallas_denoiser(x_bcl, time_step, slab_in, slab_out):
    B, C, L = x_bcl.shape
    return pl.pallas_call(
        _fused_denoiser_kernel,
        out_shape=jax.ShapeDtypeStruct((B, C, L), x_bcl.dtype),
        # No grid: single invocation, whole operands resident, no double-buffering.
        in_specs=[
            pl.BlockSpec(memory_space=pltpu.MemorySpace.SMEM),   # time_step scalars
            pl.BlockSpec(memory_space=pltpu.MemorySpace.VMEM),   # x (B,C,L)
            pl.BlockSpec(memory_space=pltpu.MemorySpace.VMEM),   # packed slab 1
            pl.BlockSpec(memory_space=pltpu.MemorySpace.VMEM),   # packed slab 2
        ],
        out_specs=pl.BlockSpec(memory_space=pltpu.MemorySpace.VMEM),
    )(time_step, x_bcl, slab_in, slab_out)


def prepare_kernel_params(p):
    """One-time (init) layout prep: transpose + concatenate into two packed slabs."""
    slab_in = jnp.concatenate(
        [p["w_t"].T,                   # (H, D)
         p["b_t"].reshape(-1, 1),      # (H, 1)
         p["w_in"].T,                  # (H, C)
         p["b_in"].reshape(-1, 1)],    # (H, 1)
        axis=1).astype(jnp.float32)    # (H, D+C+2) = (32, 27)
    slab_out = jnp.concatenate(
        [p["w_out"].T,                 # (C, H)
         p["b_out"].reshape(-1, 1)],   # (C, 1)
        axis=1).astype(jnp.float32)    # (C, H+1)   = (9, 33)
    return {"slab_in": slab_in, "slab_out": slab_out}


def model_wrapper_forward(x_flat, time_step, packed):
    """Mirrors ModelWrapper.forward:
        x = x.view(B, in_channels, -1); y = model((x, t)); return y.view(B, -1)
    Both .views are free reshapes; the model body is one pallas_call.
    """
    B = x_flat.shape[0]
    x_bcl = x_flat.reshape(B, IN_CHANNELS, -1)            # PyTorch .view (bitcast)
    y_bcl = pallas_denoiser(x_bcl, time_step, packed["slab_in"], packed["slab_out"])
    return y_bcl.reshape(B, -1)                           # PyTorch .view(B, -1)


if __name__ == "__main__":
    key = jax.random.PRNGKey(0)
    kx, kp = jax.random.split(key)

    # flat batch input, shape (B, C*seq_length), as ModelWrapper expects
    x_flat = jax.random.normal(kx, (BATCH, IN_CHANNELS * SEQ_LEN), dtype=jnp.float32)
    # backward-diffusion time steps, one per batch element
    time_step = jnp.array([5, 37], dtype=jnp.int32)

    ks = jax.random.split(kp, 6)
    params = {
        "w_t":   0.1 * jax.random.normal(ks[0], (TIME_EMB_DIM, HIDDEN), jnp.float32),
        "b_t":   0.1 * jax.random.normal(ks[1], (HIDDEN,), jnp.float32),
        "w_in":  0.1 * jax.random.normal(ks[2], (IN_CHANNELS, HIDDEN), jnp.float32),
        "b_in":  0.1 * jax.random.normal(ks[3], (HIDDEN,), jnp.float32),
        "w_out": 0.1 * jax.random.normal(ks[4], (HIDDEN, IN_CHANNELS), jnp.float32),
        "b_out": 0.1 * jax.random.normal(ks[5], (IN_CHANNELS,), jnp.float32),
    }
    packed = prepare_kernel_params(params)   # done once at init, not per forward call

    fwd = jax.jit(model_wrapper_forward)
    out = fwd(x_flat, time_step, packed)
    jax.block_until_ready(out)
    assert out.shape == x_flat.shape, (out.shape, x_flat.shape)
    assert out.dtype == jnp.float32

    # correctness check against a pure-JAX reference of the same synthetic model
    def _ref(x_flat, t, p):
        B = x_flat.shape[0]
        x = x_flat.reshape(B, IN_CHANNELS, -1)                     # (B, C, L)
        half = TIME_EMB_DIM // 2
        freqs = jnp.exp(-jnp.log(10000.0) * jnp.arange(half, dtype=jnp.float32) / half)
        a = t.astype(jnp.float32)[:, None] * freqs[None, :]
        emb = jnp.concatenate([jnp.sin(a), jnp.cos(a)], axis=-1)   # (B, D)
        te = emb @ p["w_t"] + p["b_t"]
        te = te * (1.0 / (1.0 + jnp.exp(-te)))                     # exact SiLU
        h = (jnp.einsum("ch,bcl->bhl", p["w_in"], x)
             + p["b_in"][None, :, None] + te[:, :, None])
        h = jnp.maximum(h, 0.0)
        y = jnp.einsum("hc,bhl->bcl", p["w_out"], h) + p["b_out"][None, :, None]
        return y.reshape(B, -1)                                    # NCL flatten == .view(B,-1)

    ref = _ref(x_flat, time_step, params)
    err = float(jnp.max(jnp.abs(out - ref)))
    # tolerance covers the EUP approximate-reciprocal SiLU gate (error << 1e-3 here)
    assert jnp.allclose(out, ref, atol=2e-3, rtol=2e-3), err

    print("KERNEL_OK")
</pallas_src>

<mosaic_0001>
module attributes {stable_mosaic.version = 11 : i64} {
  func.func @_fused_denoiser_kernel(%arg0: memref<2xi32, #tpu.memory_space<smem>>, %arg1: memref<2x9x16xf32, #tpu.memory_space<vmem>>, %arg2: memref<32x27xf32, #tpu.memory_space<vmem>>, %arg3: memref<9x33xf32, #tpu.memory_space<vmem>>, %arg4: memref<2x9x16xf32, #tpu.memory_space<vmem>>) attributes {dimension_semantics = [], scalar_prefetch = 0 : i64, scratch_operands = 0 : i64, tpu.core_type = #tpu.core_type<tc>} {
    %c0 = arith.constant 0 : index
    %c0_0 = arith.constant 0 : index
    %0 = vector.load %arg2[%c0, %c0_0] : memref<32x27xf32, #tpu.memory_space<vmem>>, vector<32x16xf32>
    %c0_1 = arith.constant 0 : index
    %c16 = arith.constant 16 : index
    %1 = vector.load %arg2[%c0_1, %c16] : memref<32x27xf32, #tpu.memory_space<vmem>>, vector<32x1xf32>
    %c0_2 = arith.constant 0 : index
    %c17 = arith.constant 17 : index
    %2 = vector.load %arg2[%c0_2, %c17] : memref<32x27xf32, #tpu.memory_space<vmem>>, vector<32x9xf32>
    %c0_3 = arith.constant 0 : index
    %c26 = arith.constant 26 : index
    %3 = vector.load %arg2[%c0_3, %c26] : memref<32x27xf32, #tpu.memory_space<vmem>>, vector<32x1xf32>
    %c0_4 = arith.constant 0 : index
    %c0_5 = arith.constant 0 : index
    %4 = vector.load %arg3[%c0_4, %c0_5] : memref<9x33xf32, #tpu.memory_space<vmem>>, vector<9x32xf32>
    %c0_6 = arith.constant 0 : index
    %c32 = arith.constant 32 : index
    %5 = vector.load %arg3[%c0_6, %c32] : memref<9x33xf32, #tpu.memory_space<vmem>>, vector<9x1xf32>
    %6 = tpu.iota {dimensions = array<i32: 1>} : vector<8x32xi32>
    %cst = arith.constant 0.000000e+00 : f32
    %7 = vector.broadcast %cst : f32 to vector<8x32xf32>
    %c0_i32 = arith.constant 0 : i32
    %8 = vector.broadcast %c0_i32 : i32 to vector<8x32xi32>
    %9 = arith.cmpi sge, %6, %8 : vector<8x32xi32>
    %c16_i32 = arith.constant 16 : i32
    %10 = vector.broadcast %c16_i32 : i32 to vector<8x32xi32>
    %11 = arith.cmpi slt, %6, %10 : vector<8x32xi32>
    %12 = arith.andi %9, %11 : vector<8x32xi1>
    %c0_7 = arith.constant 0 : index
    %13 = memref.load %arg0[%c0_7] : memref<2xi32, #tpu.memory_space<smem>>
    %14 = arith.sitofp %13 : i32 to f32
    %15 = vector.broadcast %14 : f32 to vector<8x32xf32>
    %16 = arith.select %12, %15, %7 : vector<8x32xi1>, vector<8x32xf32>
    %c16_i32_8 = arith.constant 16 : i32
    %17 = vector.broadcast %c16_i32_8 : i32 to vector<8x32xi32>
    %18 = arith.cmpi sge, %6, %17 : vector<8x32xi32>
    %c32_i32 = arith.constant 32 : i32
    %19 = vector.broadcast %c32_i32 : i32 to vector<8x32xi32>
    %20 = arith.cmpi slt, %6, %19 : vector<8x32xi32>
    %21 = arith.andi %18, %20 : vector<8x32xi1>
    %c1 = arith.constant 1 : index
    %22 = memref.load %arg0[%c1] : memref<2xi32, #tpu.memory_space<smem>>
    %23 = arith.sitofp %22 : i32 to f32
    %24 = vector.broadcast %23 : f32 to vector<8x32xf32>
    %25 = arith.select %21, %24, %16 : vector<8x32xi1>, vector<8x32xf32>
    %26 = tpu.iota {dimensions = array<i32: 0>} : vector<8x32xi32>
    %27 = arith.sitofp %26 : vector<8x32xi32> to vector<8x32xf32>
    %cst_9 = arith.constant -1.15129256 : f32
    %28 = vector.broadcast %cst_9 : f32 to vector<8x32xf32>
    %29 = arith.mulf %27, %28 : vector<8x32xf32>
    %30 = math.exp %29 : vector<8x32xf32>
    %31 = arith.mulf %30, %25 : vector<8x32xf32>
    %32 = math.sin %31 : vector<8x32xf32>
    %33 = math.cos %31 : vector<8x32xf32>
    %34 = tpu.concatenate %32, %33 in 0 : vector<8x32xf32>, vector<8x32xf32> -> vector<16x32xf32>
    %cst_10 = arith.constant dense<0.000000e+00> : vector<32x32xf32>
    %35 = tpu.matmul %0, %34, %cst_10 {dimension_numbers = #tpu.dot_dimension_numbers<[1], [0], [0], [1], [0, 0, 1, 1], [], []>} : vector<32x16xf32>, vector<16x32xf32>, vector<32x32xf32> -> vector<32x32xf32>
    %36 = vector.broadcast %1 : vector<32x1xf32> to vector<32x32xf32>
    %37 = arith.addf %35, %36 : vector<32x32xf32>
    %cst_11 = arith.constant 0.000000e+00 : f32
    %38 = vector.broadcast %cst_11 : f32 to vector<32x32xf32>
    %39 = arith.subf %38, %37 : vector<32x32xf32>
    %40 = math.exp %39 : vector<32x32xf32>
    %cst_12 = arith.constant 1.000000e+00 : f32
    %41 = vector.broadcast %cst_12 : f32 to vector<32x32xf32>
    %42 = arith.addf %41, %40 : vector<32x32xf32>
    %43 = tpu.reciprocal %42 {approx = true} : vector<32x32xf32> -> vector<32x32xf32>
    %44 = arith.mulf %37, %43 : vector<32x32xf32>
    %c0_13 = arith.constant 0 : index
    %c0_14 = arith.constant 0 : index
    %c0_15 = arith.constant 0 : index
    %45 = vector.load %arg1[%c0_13, %c0_14, %c0_15] : memref<2x9x16xf32, #tpu.memory_space<vmem>>, vector<1x9x16xf32>
    %46 = vector.shape_cast %45 : vector<1x9x16xf32> to vector<9x16xf32>
    %c1_16 = arith.constant 1 : index
    %c0_17 = arith.constant 0 : index
    %c0_18 = arith.constant 0 : index
    %47 = vector.load %arg1[%c1_16, %c0_17, %c0_18] : memref<2x9x16xf32, #tpu.memory_space<vmem>>, vector<1x9x16xf32>
    %48 = vector.shape_cast %47 : vector<1x9x16xf32> to vector<9x16xf32>
    %49 = tpu.concatenate %46, %48 in 1 : vector<9x16xf32>, vector<9x16xf32> -> vector<9x32xf32>
    %cst_19 = arith.constant dense<0.000000e+00> : vector<32x32xf32>
    %50 = tpu.matmul %2, %49, %cst_19 {dimension_numbers = #tpu.dot_dimension_numbers<[1], [0], [0], [1], [0, 0, 1, 1], [], []>} : vector<32x9xf32>, vector<9x32xf32>, vector<32x32xf32> -> vector<32x32xf32>
    %51 = vector.broadcast %3 : vector<32x1xf32> to vector<32x32xf32>
    %52 = arith.addf %50, %51 : vector<32x32xf32>
    %53 = arith.addf %52, %44 : vector<32x32xf32>
    %cst_20 = arith.constant 0.000000e+00 : f32
    %54 = vector.broadcast %cst_20 : f32 to vector<32x32xf32>
    %55 = arith.maximumf %53, %54 : vector<32x32xf32>
    %cst_21 = arith.constant dense<0.000000e+00> : vector<9x32xf32>
    %56 = tpu.matmul %4, %55, %cst_21 {dimension_numbers = #tpu.dot_dimension_numbers<[1], [0], [0], [1], [0, 0, 1, 1], [], []>} : vector<9x32xf32>, vector<32x32xf32>, vector<9x32xf32> -> vector<9x32xf32>
    %57 = vector.broadcast %5 : vector<9x1xf32> to vector<9x32xf32>
    %58 = arith.addf %56, %57 : vector<9x32xf32>
    %59 = vector.extract_strided_slice %58 {offsets = [0, 0], sizes = [9, 16], strides = [1, 1]} : vector<9x32xf32> to vector<9x16xf32>
    %c0_22 = arith.constant 0 : index
    %c0_23 = arith.constant 0 : index
    %c0_24 = arith.constant 0 : index
    %60 = vector.load %arg4[%c0_22, %c0_23, %c0_24] : memref<2x9x16xf32, #tpu.memory_space<vmem>>, vector<1x9x16xf32>
    %61 = vector.shape_cast %60 : vector<1x9x16xf32> to vector<9x16xf32>
    %62 = vector.shape_cast %59 : vector<9x16xf32> to vector<1x9x16xf32>
    tpu.vector_store %arg4[%c0_22, %c0_23, %c0_24], %62 {strides = array<i32>} : memref<2x9x16xf32, #tpu.memory_space<vmem>>, vector<1x9x16xf32>,
    %63 = vector.extract_strided_slice %58 {offsets = [0, 16], sizes = [9, 16], strides = [1, 1]} : vector<9x32xf32> to vector<9x16xf32>
    %c1_25 = arith.constant 1 : index
    %c0_26 = arith.constant 0 : index
    %c0_27 = arith.constant 0 : index
    %64 = vector.load %arg4[%c1_25, %c0_26, %c0_27] : memref<2x9x16xf32, #tpu.memory_space<vmem>>, vector<1x9x16xf32>
    %65 = vector.shape_cast %64 : vector<1x9x16xf32> to vector<9x16xf32>
    %66 = vector.shape_cast %63 : vector<9x16xf32> to vector<1x9x16xf32>
    tpu.vector_store %arg4[%c1_25, %c0_26, %c0_27], %66 {strides = array<i32>} : memref<2x9x16xf32, #tpu.memory_space<vmem>>, vector<1x9x16xf32>,
    return
  }
}

</mosaic_0001>

<llo_original>
// kernel: model_wrapper_forward.1
$region0: #{model_wrapper_forward.1}
  #allocation0 [shape = 'u32[]', space=smem, size = 0x4, offset = 0x4, fixed_abs, tag = 'smem constant byte address 0x4 - core index']
  #allocation1 [shape = 'u32[144,128]{1,0:T(1,128)}', space=vmem, size = 0x12000, scoped, tag = 'internal scratch']
  %s0 = inlined_call_operand.vmem [shape: s32[2], index: 0, kind: input, shape index: {}]
  %s1 = inlined_call_operand.vmem [shape: f32[2,9,16], index: 1, kind: input, shape index: {}]
  %s2 = inlined_call_operand.vmem [shape: f32[32,27], index: 2, kind: input, shape index: {}]
  %s3 = inlined_call_operand.hbm [shape: f32[9,33], index: 3, kind: input, shape index: {}]
  %s4 = inlined_call_operand.vmem [shape: f32[2,9,16], index: 4, kind: output, shape index: {}]
  %s5 = sld [smem:[#allocation0]]
  $region34: #{model_wrapper_forward.1} parent=0
    _
  %s7 = ssub.s32 1, %s5
  %s8 = scalar_select 0, %s7, %s5
  $region1: #{model_wrapper_forward.1} parent=0
    #allocation2 [shape = 'u8[512]{0}', space=smem, size = 0x200, scoped, tag = 'input window, operand 0, single buffered']
    #allocation3 [shape = 's32[1]{0}', space=sflag, size = 0x4, scoped, tag = 'scoped memory for model_wrapper_forward.1']
    #allocation4 [shape = 's32[1]{0}', space=sflag, size = 0x4, scoped, tag = 'scoped memory for model_wrapper_forward.1']
    #allocation5 [shape = 'u8[8192]{0}', space=vmem, size = 0x2000, scoped, tag = 'input window, operand 3, single buffered']
    %9 = vsyncpa [#allocation4], 0
    %10 = vsyncpa [#allocation3], 0
    // Predicated region
    $region2: #{model_wrapper_forward.1} parent=1 // pred_check
      _
    $region3: #{model_wrapper_forward.1} parent=1 // pred_check_branch
      %12 = sbr.rel (0) target = $region5
    $region4: #{model_wrapper_forward.1} parent=1 // pred_region
      %s14 = ssub.s32 16, 16
      %15 = vsyncadd [#allocation4], %s14
      %s17 = sshll.u32 %s0, 4
      %s18 = int_to_ptr.vmem [resolvable:$true] %s17
      %20 = dma.vmem_to_smem %s18, 16, [#allocation2], [#allocation4]
    $region5: #{model_wrapper_forward.1} parent=1 // pred_fallthru
      _
    // Predicated region
    $region6: #{model_wrapper_forward.1} parent=1 // pred_check
      _
    $region7: #{model_wrapper_forward.1} parent=1 // pred_check_branch
      %22 = sbr.rel (0) target = $region9
    $region8: #{model_wrapper_forward.1} parent=1 // pred_region
      _
    $region9: #{model_wrapper_forward.1} parent=1 // pred_fallthru
      _
    // Predicated region
    $region10: #{model_wrapper_forward.1} parent=1 // pred_check
      _
    $region11: #{model_wrapper_forward.1} parent=1 // pred_check_branch
      %24 = sbr.rel (0) target = $region13
    $region12: #{model_wrapper_forward.1} parent=1 // pred_region
      _
    $region13: #{model_wrapper_forward.1} parent=1 // pred_fallthru
      _
    // Predicated region
    $region14: #{model_wrapper_forward.1} parent=1 // pred_check
      _
    $region15: #{model_wrapper_forward.1} parent=1 // pred_check_branch
      %26 = sbr.rel (0) target = $region17
    $region16: #{model_wrapper_forward.1} parent=1 // pred_region
      %s28 = ssub.s32 256, 256
      %29 = vsyncadd [#allocation3], %s28
      %s30 = sshll.u32 [#allocation5], 4
      %s31 = int_to_ptr.vmem [resolvable:$true] %s30
      %36 = dma.hbm_to_vmem [thread:$0]  %s3, 256, %s31, [#allocation3], 128, 128, 8
    $region17: #{model_wrapper_forward.1} parent=1 // pred_fallthru
      _
    // Predicated region
    $region18: #{model_wrapper_forward.1} parent=1 // pred_check
      _
    $region19: #{model_wrapper_forward.1} parent=1 // pred_check_branch
      %38 = sbr.rel (0) target = $region21
    $region20: #{model_wrapper_forward.1} parent=1 // pred_region
      %39 = dma.done [#allocation4], 16
    $region21: #{model_wrapper_forward.1} parent=1 // pred_fallthru
      _
    // Predicated region
    $region22: #{model_wrapper_forward.1} parent=1 // pred_check
      _
    $region23: #{model_wrapper_forward.1} parent=1 // pred_check_branch
      %41 = sbr.rel (0) target = $region25
    $region24: #{model_wrapper_forward.1} parent=1 // pred_region
      %42 = dma.done [#allocation3], 256
    $region25: #{model_wrapper_forward.1} parent=1 // pred_fallthru
      _
    %43 = sfence
    %v44 = vld [vmem:[%s2] sm:$0xff]
    %v45 = vld [vmem:[%s2 + $0x8] sm:$0xff]
    %v46 = vld [vmem:[%s2 + $0x10] sm:$0xff]
    %v47 = vld [vmem:[%s2 + $0x18] sm:$0xff]
    %v48 = vld [vmem:[#allocation5] sm:$0xff]
    %v49 = vld [vmem:[#allocation5 + $0x8] sm:$0x1]
    %v50 = vlaneseq
    %v51 = vand.u32 %v50, 127
    %vm52 = vcmp.ge.s32.totalorder %v51, 0
    %vm53 = vcmp.lt.s32.totalorder %v51, 16
    %vm54 = vmand %vm52, %vm53
    %s55 = sld [smem:[#allocation2]]
    %s56 = scvt.s32.f32 %s55
    %v57 = vstv %s56
    %v58 = vsel %vm54, %v57, 0.0
    %vm59 = vcmp.ge.s32.totalorder %v51, 16
    %vm60 = vcmp.lt.s32.totalorder %v51, 32
    %vm61 = vmand %vm59, %vm60
    %s62 = sld [smem:[#allocation2 + $0x1]]
    %s63 = scvt.s32.f32 %s62
    %v64 = vstv %s63
    %v65 = vsel %vm61, %v64, %v58
    %v66 = vlaneseq
    %v67 = vshrl.u32 %v66, 7
    %v68 = vcvt.s32.f32 %v67
    %v69 = vmul.f32 %v68, -1.1512926
    %v70 = vmul.f32 %v69, 1.442695
    %v71 = vpow.pop %v70
    %v72 = vmul.f32 %v71, %v65
    %v73 = vand.u32 2147483647, %v72
    %vm74 = vcmp.le.f32.partialorder %v73, 0.7853982
    %vm75 = vcmp.lt.s32.totalorder %v72, 0
    %v76 = vand.u32 %v72, 2139095040
    %v77 = vshrl.u32 %v76, 23
    %v78 = vsub.s32 %v77, 127
    %v79 = vand.u32 2147483647, %v72
    %v80 = vand.u32 %v79, 8388607
    %v81 = vor.u32 %v80, 8388608
    %v82 = vsub.s32 0, %v81
    %v83 = vadd.s32 %v78, 1
    %vm84 = vcmp.gt.s32.totalorder %v83, 0
    %v85 = vsel %vm84, %v83, 0
    %v86 = vshrl.u32 %v85, 5
    %v87 = vand.u32 %v85, 31
    %v88 = vsub.s32 32, %v87
    %v89 = vshrl.u32 683565275, %v88
    %v90 = vshll.u32 683565275, %v87
    %v91 = vshrl.u32 2475754826, %v88
    %v92 = vor.u32 %v90, %v91
    %v93 = vshll.u32 2475754826, %v87
    %v94 = vshrl.u32 2131351028, %v88
    %v95 = vor.u32 %v93, %v94
    %v96 = vshll.u32 2131351028, %v87
    %v97 = vshrl.u32 2102212464, %v88
    %v98 = vor.u32 %v96, %v97
    %v99 = vshll.u32 2102212464, %v87
    %v100 = vshrl.u32 920167782, %v88
    %v101 = vor.u32 %v99, %v100
    %v102 = vshll.u32 920167782, %v87
    %v103 = vshrl.u32 1326507024, %v88
    %v104 = vor.u32 %v102, %v103
    %vm105 = vcmp.lt.s32.totalorder %v86, 1
    %vm106 = vcmp.lt.s32.totalorder %v86, 2
    %vm107 = vcmp.lt.s32.totalorder %v86, 3
    %vm108 = vcmp.lt.s32.totalorder %v86, 4
    %v109 = vsel %vm105, %v89, %v92
    %v110 = vsel %vm108, %v98, 2102212464
    %v111 = vsel %vm107, %v95, %v110
    %v112 = vsel %vm106, %v109, %v111
    %v113 = vsel %vm105, %v92, %v95
    %v114 = vsel %vm108, %v101, 920167782
    %v115 = vsel %vm107, %v98, %v114
    %v116 = vsel %vm106, %v113, %v115
    %v117 = vsel %vm105, %v95, %v98
    %v118 = vsel %vm108, %v104, 1326507024
    %v119 = vsel %vm107, %v101, %v118
    %v120 = vsel %vm106, %v117, %v119
    %v121 = vshll.u32 %v81, 8
    %v122 = vmul.u32.u64.compose %v121, %v120
    %v123 = vextract.low.u32 %v122
    %v124 = vextract.high.u32 %v122
    %v125 = vmul.u32.u64.compose %v121, %v116
    %v126 = vextract.low.u32 %v125
    %v127 = vextract.high.u32 %v125
    %v128 = vmul.u32 %v121, %v112
    %v129 = vadd.s32 %v124, %v126
    %vm130 = vc.u32 %v124, %v126
    %v131 = vadd.s32 %v127, 1
    %v132 = vsel %vm130, %v131, %v127
    %v133 = vadd.s32 %v128, %v132
    %v134 = vadd.s32 %v133, 536870912
    %v135 = vshrl.u32 %v134, 30
    %v136 = vshll.u32 %v135, 30
    %v137 = vsub.s32 %v133, %v136
    %vm138 = vcmp.lt.s32.totalorder %v137, 0
    %v139 = vsub.s32 0, %v137
    %v140 = vsel %vm138, %v139, %v137
    %v141 = vclz %v140
    %v142 = vsub.s32 %v141, 2
    %vm143 = vcmp.gt.s32.totalorder 0, %v142
    %v144 = vsel %vm143, 0, %v142
    %v145 = vsub.s32 32, %v144
    %v146 = vshll.u32 %v137, %v144
    %v147 = vshrl.u32 %v129, %v145
    %v148 = vor.u32 %v146, %v147
    %v149 = vsub.s32 4294967266, %v144
    %v150 = vadd.s32 %v149, 127
    %v151 = vshll.u32 %v150, 23
    %v152 = vor.u32 4788187, %v151
    %v153 = vand.u32 2147483647, %v152
    %v155 = vcvt.s32.f32 %v148
    %v156 = vmul.f32 %v155, %v153
    %v157 = vxor.u32 %v156, 2147483648
    %v158 = vsel %vm75, %v157, %v156
    %v159 = vsub.s32 4, %v135
    %v160 = vsel %vm75, %v159, %v135
    %v161 = vsel %vm74, %v72, %v158
    %v162 = vsel %vm74, 0, %v160
    %v163 = vcosq.f32.pop %v161
    %v164 = vsinq.f32.pop %v161
    %vm165 = vweird.f32 %v72
    %v166 = vadd.s32 %v162, 3
    %v167 = vand.u32 %v166, 3
    %vm168 = vcmp.lt.s32.totalorder %v167, 2
    %vm169 = vcmp.eq.s32.totalorder %v167, 0
    %v170 = vxor.u32 %v164, 2147483648
    %v171 = vsel %vm169, %v163, %v170
    %vm172 = vcmp.eq.s32.totalorder %v167, 2
    %v173 = vxor.u32 %v163, 2147483648
    %v174 = vsel %vm172, %v173, %v164
    %v175 = vsel %vm168, %v171, %v174
    %v176 = vsel %vm165, nan, %v175
    %v177 = vand.u32 2147483647, %v72
    %vm178 = vcmp.le.f32.partialorder %v177, 0.7853982
    %vm179 = vcmp.lt.s32.totalorder %v72, 0
    %v180 = vand.u32 %v72, 2139095040
    %v181 = vshrl.u32 %v180, 23
    %v182 = vsub.s32 %v181, 127
    %v183 = vand.u32 2147483647, %v72
    %v184 = vand.u32 %v183, 8388607
    %v185 = vor.u32 %v184, 8388608
    %v186 = vsub.s32 0, %v185
    %v187 = vadd.s32 %v182, 1
    %vm188 = vcmp.gt.s32.totalorder %v187, 0
    %v189 = vsel %vm188, %v187, 0
    %v190 = vshrl.u32 %v189, 5
    %v191 = vand.u32 %v189, 31
    %v192 = vsub.s32 32, %v191
    %v193 = vshrl.u32 683565275, %v192
    %v194 = vshll.u32 683565275, %v191
    %v195 = vshrl.u32 2475754826, %v192
    %v196 = vor.u32 %v194, %v195
    %v197 = vshll.u32 2475754826, %v191
    %v198 = vshrl.u32 2131351028, %v192
    %v199 = vor.u32 %v197, %v198
    %v200 = vshll.u32 2131351028, %v191
    %v201 = vshrl.u32 2102212464, %v192
    %v202 = vor.u32 %v200, %v201
    %v203 = vshll.u32 2102212464, %v191
    %v204 = vshrl.u32 920167782, %v192
    %v205 = vor.u32 %v203, %v204
    %v206 = vshll.u32 920167782, %v191
    %v207 = vshrl.u32 1326507024, %v192
    %v208 = vor.u32 %v206, %v207
    %vm209 = vcmp.lt.s32.totalorder %v190, 1
    %vm210 = vcmp.lt.s32.totalorder %v190, 2
    %vm211 = vcmp.lt.s32.totalorder %v190, 3
    %vm212 = vcmp.lt.s32.totalorder %v190, 4
    %v213 = vsel %vm209, %v193, %v196
    %v214 = vsel %vm212, %v202, 2102212464
    %v215 = vsel %vm211, %v199, %v214
    %v216 = vsel %vm210, %v213, %v215
    %v217 = vsel %vm209, %v196, %v199
    %v218 = vsel %vm212, %v205, 920167782
    %v219 = vsel %vm211, %v202, %v218
    %v220 = vsel %vm210, %v217, %v219
    %v221 = vsel %vm209, %v199, %v202
    %v222 = vsel %vm212, %v208, 1326507024
    %v223 = vsel %vm211, %v205, %v222
    %v224 = vsel %vm210, %v221, %v223
    %v225 = vshll.u32 %v185, 8
    %v226 = vmul.u32.u64.compose %v225, %v224
    %v227 = vextract.low.u32 %v226
    %v228 = vextract.high.u32 %v226
    %v229 = vmul.u32.u64.compose %v225, %v220
    %v230 = vextract.low.u32 %v229
    %v231 = vextract.high.u32 %v229
    %v232 = vmul.u32 %v225, %v216
    %v233 = vadd.s32 %v228, %v230
    %vm234 = vc.u32 %v228, %v230
    %v235 = vadd.s32 %v231, 1
    %v236 = vsel %vm234, %v235, %v231
    %v237 = vadd.s32 %v232, %v236
    %v238 = vadd.s32 %v237, 536870912
    %v239 = vshrl.u32 %v238, 30
    %v240 = vshll.u32 %v239, 30
    %v241 = vsub.s32 %v237, %v240
    %vm242 = vcmp.lt.s32.totalorder %v241, 0
    %v243 = vsub.s32 0, %v241
    %v244 = vsel %vm242, %v243, %v241
    %v245 = vclz %v244
    %v246 = vsub.s32 %v245, 2
    %vm247 = vcmp.gt.s32.totalorder 0, %v246
    %v248 = vsel %vm247, 0, %v246
    %v249 = vsub.s32 32, %v248
    %v250 = vshll.u32 %v241, %v248
    %v251 = vshrl.u32 %v233, %v249
    %v252 = vor.u32 %v250, %v251
    %v253 = vsub.s32 4294967266, %v248
    %v254 = vadd.s32 %v253, 127
    %v255 = vshll.u32 %v254, 23
    %v256 = vor.u32 4788187, %v255
    %v257 = vand.u32 2147483647, %v256
    %v259 = vcvt.s32.f32 %v252
    %v260 = vmul.f32 %v259, %v257
    %v261 = vxor.u32 %v260, 2147483648
    %v262 = vsel %vm179, %v261, %v260
    %v263 = vsub.s32 4, %v239
    %v264 = vsel %vm179, %v263, %v239
    %v265 = vsel %vm178, %v72, %v262
    %v266 = vsel %vm178, 0, %v264
    %v267 = vcosq.f32.pop %v265
    %v268 = vsinq.f32.pop %v265
    %vm269 = vweird.f32 %v72
    %v270 = vand.u32 %v266, 3
    %vm271 = vcmp.lt.s32.totalorder %v270, 2
    %vm272 = vcmp.eq.s32.totalorder %v270, 0
    %v273 = vxor.u32 %v268, 2147483648
    %v274 = vsel %vm272, %v267, %v273
    %vm275 = vcmp.eq.s32.totalorder %v270, 2
    %v276 = vxor.u32 %v267, 2147483648
    %v277 = vsel %vm275, %v276, %v268
    %v278 = vsel %vm271, %v274, %v277
    %v279 = vsel %vm269, nan, %v278
    %281 = vset.pattern.permute.xlu0 16
    %282 = vperm.xlu0 %281, %v44
    %v283 = vpop.permute.xlu0 %282
    %286 = vset.pattern.permute.xlu0 16
    %287 = vperm.xlu0 %286, %v45
    %v288 = vpop.permute.xlu0 %287
    %291 = vset.pattern.permute.xlu0 16
    %292 = vperm.xlu0 %291, %v46
    %v293 = vpop.permute.xlu0 %292
    %296 = vset.pattern.permute.xlu0 16
    %297 = vperm.xlu0 %296, %v47
    %v298 = vpop.permute.xlu0 %297
    %vm300 = vcmask 130048
    %v301 = vsel %vm300, %v44, 0
    %v303 = vsel %vm300, %v45, 0
    %v305 = vsel %vm300, %v46, 0
    %v307 = vsel %vm300, %v47, 0
    %309 = vmatprep.subr.mxu0 0.0
    %310 = vmatpush1.msra.mxu0 0.0
    %311 = vmatprep.subr.mxu0 0.0
    %312 = vmatpush1.msra.mxu0 0.0
    %313 = vmatprep.subr.mxu0 0.0
    %314 = vmatpush1.msra.mxu0 0.0
    %315 = vmatprep.subr.mxu0 0.0
    %316 = vmatpush1.msra.mxu0 0.0
    %317 = vmatprep.subr.mxu0 0.0
    %318 = vmatpush1.msra.mxu0 0.0
    %319 = vmatprep.subr.mxu0 0.0
    %320 = vmatpush1.msra.mxu0 0.0
    %321 = vmatprep.subr.mxu0 0.0
    %322 = vmatpush1.msra.mxu0 0.0
    %323 = vmatprep.subr.mxu0 0.0
    %324 = vmatpush1.msra.mxu0 0.0
    %325 = vmatprep.subr.mxu0 0.0
    %326 = vmatpush1.msra.mxu0 0.0
    %327 = vmatprep.subr.mxu0 0.0
    %328 = vmatpush1.msra.mxu0 0.0
    %329 = vmatprep.subr.mxu0 0.0
    %330 = vmatpush1.msra.mxu0 0.0
    %331 = vmatprep.subr.mxu0 0.0
    %332 = vmatpush1.msra.mxu0 0.0
    %333 = vmatprep.subr.mxu0 0.0
    %334 = vmatpush1.msra.mxu0 0.0
    %335 = vmatprep.subr.mxu0 0.0
    %336 = vmatpush1.msra.mxu0 0.0
    %337 = vmatprep.subr.mxu0 0.0
    %338 = vmatpush1.msra.mxu0 %v279
    %339 = vmatprep.subr.mxu0 0.0
    %340 = vmatpush1.msra.mxu0 %v176
    %341 = vmatprep.subr.mxu0 0.0
    %342 = vmatpush2.msra.mxu0 0.0
    %343 = vmatprep.subr.mxu0 0.0
    %344 = vmatpush2.msra.mxu0 0.0
    %345 = vmatprep.subr.mxu0 0.0
    %346 = vmatpush2.msra.mxu0 0.0
    %347 = vmatprep.subr.mxu0 0.0
    %348 = vmatpush2.msra.mxu0 0.0
    %349 = vmatprep.subr.mxu0 0.0
    %350 = vmatpush2.msra.mxu0 0.0
    %351 = vmatprep.subr.mxu0 0.0
    %352 = vmatpush2.msra.mxu0 0.0
    %353 = vmatprep.subr.mxu0 0.0
    %354 = vmatpush2.msra.mxu0 0.0
    %355 = vmatprep.subr.mxu0 0.0
    %356 = vmatpush2.msra.mxu0 0.0
    %357 = vmatprep.subr.mxu0 0.0
    %358 = vmatpush2.msra.mxu0 0.0
    %359 = vmatprep.subr.mxu0 0.0
    %360 = vmatpush2.msra.mxu0 0.0
    %361 = vmatprep.subr.mxu0 0.0
    %362 = vmatpush2.msra.mxu0 0.0
    %363 = vmatprep.subr.mxu0 0.0
    %364 = vmatpush2.msra.mxu0 0.0
    %365 = vmatprep.subr.mxu0 0.0
    %366 = vmatpush2.msra.mxu0 0.0
    %367 = vmatprep.subr.mxu0 0.0
    %368 = vmatpush2.msra.mxu0 0.0
    %369 = vmatprep.subr.mxu0 0.0
    %370 = vmatpush2.msra.mxu0 0.0
    %371 = vmatprep.subr.mxu0 0.0
    %372 = vmatpush2.msra.mxu0 0.0
    %373 = vmatprep.mubr.f32.mxu0 0.0
    %374 = vmatmul.mubr.f32.gmra.mxu0 %v301
    %v375 = vpop.f32.mrf.mxu0
    %v376 = vadd.f32 %v283, %v375
    %v377 = vpop.f32.mrf.mxu0
    %378 = vmatprep.mubr.f32.mxu0 0.0
    %379 = vmatmul.mubr.f32.gmra.mxu0 %v303
    %v380 = vpop.f32.mrf.mxu0
    %v381 = vadd.f32 %v288, %v380
    %v382 = vpop.f32.mrf.mxu0
    %383 = vmatprep.mubr.f32.mxu0 0.0
    %384 = vmatmul.mubr.f32.gmra.mxu0 %v305
    %v385 = vpop.f32.mrf.mxu0
    %v386 = vadd.f32 %v293, %v385
    %v387 = vpop.f32.mrf.mxu0
    %388 = vmatprep.mubr.f32.mxu0 0.0
    %389 = vmatmul.mubr.f32.gmra.mxu0 %v307
    %v390 = vpop.f32.mrf.mxu0
    %v391 = vadd.f32 %v298, %v390
    %v392 = vpop.f32.mrf.mxu0
    %393 = vdwg.mxu0
    %v394 = vsub.f32 0.0, %v376
    %v395 = vsub.f32 0.0, %v381
    %v396 = vsub.f32 0.0, %v386
    %v397 = vsub.f32 0.0, %v391
    %v398 = vmul.f32 %v394, 1.442695
    %v399 = vpow.pop %v398
    %v400 = vmul.f32 %v395, 1.442695
    %v401 = vpow.pop %v400
    %v402 = vmul.f32 %v396, 1.442695
    %v403 = vpow.pop %v402
    %v404 = vmul.f32 %v397, 1.442695
    %v405 = vpow.pop %v404
    %v406 = vadd.f32 %v399, 1.0
    %v407 = vadd.f32 %v401, 1.0
    %v408 = vadd.f32 %v403, 1.0
    %v409 = vadd.f32 %v405, 1.0
    %v410 = vrcp.pop %v406
    %v411 = vrcp.pop %v407
    %v412 = vrcp.pop %v408
    %v413 = vrcp.pop %v409
    %v414 = vmul.f32 %v376, %v410
    %v415 = vmul.f32 %v381, %v411
    %v416 = vmul.f32 %v386, %v412
    %v417 = vmul.f32 %v391, %v413
    %v418 = vld [vmem:[%s1] sm:$0xff]
    %v419 = vld [vmem:[%s1 + $0x8] sm:$0x1]
    %s420 = scalar_lea.vmem %s1, 16
    %v421 = vld [vmem:[%s420] sm:$0xff]
    %v422 = vld [vmem:[%s420 + $0x8] sm:$0x1]
    %425 = vrot.lane.b32.xlu0 %v421, 16
    %v426 = vpop.permute.xlu0 %425
    %427 = vrot.lane.b32.xlu0 %v422, 16
    %v428 = vpop.permute.xlu0 %427
    %v431 = vsel %vm300, %v418, %v426
    %v432 = vsel %vm300, %v419, %v428
    %433 = vset.pattern.permute.xlu0 26
    %434 = vperm.xlu0 %433, %v44
    %v435 = vpop.permute.xlu0 %434
    %437 = vset.pattern.permute.xlu0 26
    %438 = vperm.xlu0 %437, %v45
    %v439 = vpop.permute.xlu0 %438
    %441 = vset.pattern.permute.xlu0 26
    %442 = vperm.xlu0 %441, %v46
    %v443 = vpop.permute.xlu0 %442
    %445 = vset.pattern.permute.xlu0 26
    %446 = vperm.xlu0 %445, %v47
    %v447 = vpop.permute.xlu0 %446
    %449 = vrot.lane.b32.xlu0 %v44, 111
    %v450 = vpop.permute.xlu0 %449
    %451 = vrot.lane.b32.xlu0 %v45, 111
    %v452 = vpop.permute.xlu0 %451
    %453 = vrot.lane.b32.xlu0 %v46, 111
    %v454 = vpop.permute.xlu0 %453
    %455 = vrot.lane.b32.xlu0 %v47, 111
    %v456 = vpop.permute.xlu0 %455
    %vm457 = vcmask 72704
    %v458 = vsel %vm457, %v450, 0
    %v460 = vsel %vm457, %v452, 0
    %v462 = vsel %vm457, %v454, 0
    %v464 = vsel %vm457, %v456, 0
    %vm466 = vcmask 1040384
    %v468 = vsel %vm466, %v432, 0
    %470 = vmatprep.subr.mxu0 0.0
    %471 = vmatpush1.msra.mxu0 0.0
    %472 = vmatprep.subr.mxu0 0.0
    %473 = vmatpush1.msra.mxu0 0.0
    %474 = vmatprep.subr.mxu0 0.0
    %475 = vmatpush1.msra.mxu0 0.0
    %476 = vmatprep.subr.mxu0 0.0
    %477 = vmatpush1.msra.mxu0 0.0
    %478 = vmatprep.subr.mxu0 0.0
    %479 = vmatpush1.msra.mxu0 0.0
    %480 = vmatprep.subr.mxu0 0.0
    %481 = vmatpush1.msra.mxu0 0.0
    %482 = vmatprep.subr.mxu0 0.0
    %483 = vmatpush1.msra.mxu0 0.0
    %484 = vmatprep.subr.mxu0 0.0
    %485 = vmatpush1.msra.mxu0 0.0
    %486 = vmatprep.subr.mxu0 0.0
    %487 = vmatpush1.msra.mxu0 0.0
    %488 = vmatprep.subr.mxu0 0.0
    %489 = vmatpush1.msra.mxu0 0.0
    %490 = vmatprep.subr.mxu0 0.0
    %491 = vmatpush1.msra.mxu0 0.0
    %492 = vmatprep.subr.mxu0 0.0
    %493 = vmatpush1.msra.mxu0 0.0
    %494 = vmatprep.subr.mxu0 0.0
    %495 = vmatpush1.msra.mxu0 0.0
    %496 = vmatprep.subr.mxu0 0.0
    %497 = vmatpush1.msra.mxu0 0.0
    %498 = vmatprep.subr.mxu0 0.0
    %499 = vmatpush1.msra.mxu0 %v468
    %500 = vmatprep.subr.mxu0 0.0
    %501 = vmatpush1.msra.mxu0 %v431
    %502 = vmatprep.subr.mxu0 0.0
    %503 = vmatpush2.msra.mxu0 0.0
    %504 = vmatprep.subr.mxu0 0.0
    %505 = vmatpush2.msra.mxu0 0.0
    %506 = vmatprep.subr.mxu0 0.0
    %507 = vmatpush2.msra.mxu0 0.0
    %508 = vmatprep.subr.mxu0 0.0
    %509 = vmatpush2.msra.mxu0 0.0
    %510 = vmatprep.subr.mxu0 0.0
    %511 = vmatpush2.msra.mxu0 0.0
    %512 = vmatprep.subr.mxu0 0.0
    %513 = vmatpush2.msra.mxu0 0.0
    %514 = vmatprep.subr.mxu0 0.0
    %515 = vmatpush2.msra.mxu0 0.0
    %516 = vmatprep.subr.mxu0 0.0
    %517 = vmatpush2.msra.mxu0 0.0
    %518 = vmatprep.subr.mxu0 0.0
    %519 = vmatpush2.msra.mxu0 0.0
    %520 = vmatprep.subr.mxu0 0.0
    %521 = vmatpush2.msra.mxu0 0.0
    %522 = vmatprep.subr.mxu0 0.0
    %523 = vmatpush2.msra.mxu0 0.0
    %524 = vmatprep.subr.mxu0 0.0
    %525 = vmatpush2.msra.mxu0 0.0
    %526 = vmatprep.subr.mxu0 0.0
    %527 = vmatpush2.msra.mxu0 0.0
    %528 = vmatprep.subr.mxu0 0.0
    %529 = vmatpush2.msra.mxu0 0.0
    %530 = vmatprep.subr.mxu0 0.0
    %531 = vmatpush2.msra.mxu0 0.0
    %532 = vmatprep.subr.mxu0 0.0
    %533 = vmatpush2.msra.mxu0 0.0
    %534 = vmatprep.mubr.f32.mxu0 0.0
    %535 = vmatmul.mubr.f32.gmra.mxu0 %v458
    %v536 = vpop.f32.mrf.mxu0
    %v537 = vadd.f32 %v435, %v536
    %v538 = vpop.f32.mrf.mxu0
    %539 = vmatprep.mubr.f32.mxu0 0.0
    %540 = vmatmul.mubr.f32.gmra.mxu0 %v460
    %v541 = vpop.f32.mrf.mxu0
    %v542 = vadd.f32 %v439, %v541
    %v543 = vpop.f32.mrf.mxu0
    %544 = vmatprep.mubr.f32.mxu0 0.0
    %545 = vmatmul.mubr.f32.gmra.mxu0 %v462
    %v546 = vpop.f32.mrf.mxu0
    %v547 = vadd.f32 %v443, %v546
    %v548 = vpop.f32.mrf.mxu0
    %549 = vmatprep.mubr.f32.mxu0 0.0
    %550 = vmatmul.mubr.f32.gmra.mxu0 %v464
    %v551 = vpop.f32.mrf.mxu0
    %v552 = vadd.f32 %v447, %v551
    %v553 = vpop.f32.mrf.mxu0
    %554 = vdwg.mxu0
    %v555 = vadd.f32 %v537, %v414
    %v556 = vadd.f32 %v542, %v415
    %v557 = vadd.f32 %v547, %v416
    %v558 = vadd.f32 %v552, %v417
    %v559 = vmax.f32 %v555, 0.0
    %v560 = vmax.f32 %v556, 0.0
    %v561 = vmax.f32 %v557, 0.0
    %v562 = vmax.f32 %v558, 0.0
    %564 = vset.pattern.permute.xlu0 32
    %565 = vperm.xlu0 %564, %v48
    %v566 = vpop.permute.xlu0 %565
    %569 = vset.pattern.permute.xlu0 32
    %570 = vperm.xlu0 %569, %v49
    %v571 = vpop.permute.xlu0 %570
    %vm573 = vcmask 261120
    %v574 = vsel %vm573, %v48, 0
    %v576 = vsel %vm573, %v49, 0
    %578 = vmatprep.subr.mxu0 0.0
    %579 = vmatpush1.msra.mxu0 0.0
    %580 = vmatprep.subr.mxu0 0.0
    %581 = vmatpush1.msra.mxu0 0.0
    %582 = vmatprep.subr.mxu0 0.0
    %583 = vmatpush1.msra.mxu0 0.0
    %584 = vmatprep.subr.mxu0 0.0
    %585 = vmatpush1.msra.mxu0 0.0
    %586 = vmatprep.subr.mxu0 0.0
    %587 = vmatpush1.msra.mxu0 0.0
    %588 = vmatprep.subr.mxu0 0.0
    %589 = vmatpush1.msra.mxu0 0.0
    %590 = vmatprep.subr.mxu0 0.0
    %591 = vmatpush1.msra.mxu0 0.0
    %592 = vmatprep.subr.mxu0 0.0
    %593 = vmatpush1.msra.mxu0 0.0
    %594 = vmatprep.subr.mxu0 0.0
    %595 = vmatpush1.msra.mxu0 0.0
    %596 = vmatprep.subr.mxu0 0.0
    %597 = vmatpush1.msra.mxu0 0.0
    %598 = vmatprep.subr.mxu0 0.0
    %599 = vmatpush1.msra.mxu0 0.0
    %600 = vmatprep.subr.mxu0 0.0
    %601 = vmatpush1.msra.mxu0 0.0
    %602 = vmatprep.subr.mxu0 0.0
    %603 = vmatpush1.msra.mxu0 %v562
    %604 = vmatprep.subr.mxu0 0.0
    %605 = vmatpush1.msra.mxu0 %v561
    %606 = vmatprep.subr.mxu0 0.0
    %607 = vmatpush1.msra.mxu0 %v560
    %608 = vmatprep.subr.mxu0 0.0
    %609 = vmatpush1.msra.mxu0 %v559
    %610 = vmatprep.subr.mxu0 0.0
    %611 = vmatpush2.msra.mxu0 0.0
    %612 = vmatprep.subr.mxu0 0.0
    %613 = vmatpush2.msra.mxu0 0.0
    %614 = vmatprep.subr.mxu0 0.0
    %615 = vmatpush2.msra.mxu0 0.0
    %616 = vmatprep.subr.mxu0 0.0
    %617 = vmatpush2.msra.mxu0 0.0
    %618 = vmatprep.subr.mxu0 0.0
    %619 = vmatpush2.msra.mxu0 0.0
    %620 = vmatprep.subr.mxu0 0.0
    %621 = vmatpush2.msra.mxu0 0.0
    %622 = vmatprep.subr.mxu0 0.0
    %623 = vmatpush2.msra.mxu0 0.0
    %624 = vmatprep.subr.mxu0 0.0
    %625 = vmatpush2.msra.mxu0 0.0
    %626 = vmatprep.subr.mxu0 0.0
    %627 = vmatpush2.msra.mxu0 0.0
    %628 = vmatprep.subr.mxu0 0.0
    %629 = vmatpush2.msra.mxu0 0.0
    %630 = vmatprep.subr.mxu0 0.0
    %631 = vmatpush2.msra.mxu0 0.0
    %632 = vmatprep.subr.mxu0 0.0
    %633 = vmatpush2.msra.mxu0 0.0
    %634 = vmatprep.subr.mxu0 0.0
    %635 = vmatpush2.msra.mxu0 0.0
    %636 = vmatprep.subr.mxu0 0.0
    %637 = vmatpush2.msra.mxu0 0.0
    %638 = vmatprep.subr.mxu0 0.0
    %639 = vmatpush2.msra.mxu0 0.0
    %640 = vmatprep.subr.mxu0 0.0
    %641 = vmatpush2.msra.mxu0 0.0
    %642 = vmatprep.mubr.f32.mxu0 0.0
    %643 = vmatmul.mubr.f32.gmra.mxu0 %v574
    %v644 = vpop.f32.mrf.mxu0
    %v645 = vadd.f32 %v566, %v644
    %v646 = vpop.f32.mrf.mxu0
    %647 = vmatprep.mubr.f32.mxu0 0.0
    %648 = vmatmul.mubr.f32.gmra.mxu0 %v576
    %v649 = vpop.f32.mrf.mxu0
    %v650 = vadd.f32 %v571, %v649
    %v651 = vpop.f32.mrf.mxu0
    %652 = vdwg.mxu0
    %653 = vst.msk [vmem:[%s4] sm:$0xff] %vm300, %v645
    %vm654 = vcmask 122880
    %655 = vst.msk [vmem:[%s4 + $0x8] sm:$0x1] %vm654, %v650
    %658 = vrot.lane.b32.xlu0 %v645, 112
    %v659 = vpop.permute.xlu0 %658
    %660 = vrot.lane.b32.xlu0 %v650, 112
    %v661 = vpop.permute.xlu0 %660
    %s664 = scalar_lea.vmem %s4, 16
    %665 = vst.msk [vmem:[%s664] sm:$0xff] %vm300, %v659
    %666 = vst.msk [vmem:[%s664 + $0x8] sm:$0x1] %vm654, %v661
    // Predicated region
    $region26: #{model_wrapper_forward.1} parent=1 // pred_check
      _
    $region27: #{model_wrapper_forward.1} parent=1 // pred_check_branch
      %668 = sbr.rel (0) target = $region29
    $region28: #{model_wrapper_forward.1} parent=1 // pred_region
      _
    $region29: #{model_wrapper_forward.1} parent=1 // pred_fallthru
      _
    // Predicated region
    $region30: #{model_wrapper_forward.1} parent=1 // pred_check
      _
    $region31: #{model_wrapper_forward.1} parent=1 // pred_check_branch
      %670 = sbr.rel (0) target = $region33
    $region32: #{model_wrapper_forward.1} parent=1 // pred_region
      _
    $region33: #{model_wrapper_forward.1} parent=1 // pred_fallthru
      _
    %671 = vsyncpa [#allocation3], 1
    %672 = vsyncpa [#allocation4], 1

</llo_original>
